<compile_context>
chip_gen: v7x
topology: tpu7x:2x2x1
jax: 0.10.0
libtpu: 0.0.40
codegen_flags: <defaults>
</compile_context>

<pallas_src>
import warnings

import numpy as np
import jax
import jax.numpy as jnp
from jax.experimental import pallas as pl
from jax.experimental.pallas import tpu as pltpu


# Minimum sublane multiple per element size (f32 / bf16 / int8 packing).
_SUBLANE = {4: 8, 2: 16, 1: 32}


def _pick_block(num_sample, H, W, itemsize):
    """Pick (c_blk, h_blk) for a (c_blk, h_blk, W) block.

    Budget: 3 MiB per block so double-buffered in+out (2 x 2 x block) fits even
    v5e's 16 MiB default scoped VMEM, with large headroom on v6e/v7x.
    c_blk is restricted to {num_sample, 1} so channel blocks never spill into
    the label channels.
    """
    cap = 3 * 1024 * 1024
    sub = _SUBLANE.get(itemsize, 8)
    row_bytes = max(W, 128) * itemsize            # account for lane padding
    if num_sample * H * row_bytes <= cap:
        return num_sample, H                      # whole sample slab, one step
    if H * row_bytes <= cap:
        return 1, H                               # one channel per step
    h_blk = max(sub, (cap // (row_bytes * sub)) * sub)
    return 1, h_blk                               # tile H in sublane multiples


def _levels_kernel(params_ref, img_ref, out_ref):
    """Elementwise levels adjustment on one (c_blk, h_blk, W) sample tile.

    params_ref (SMEM f32, shape (2,)):
      [0] levels_min
      [1] 1 / (levels_max - levels_min)
    """
    x = img_ref[...]
    if not jnp.issubdtype(x.dtype, jnp.floating):
        # TODO(synk): integer images would collapse to 0/1 after the clamp; the
        # torch module implicitly assumes float storage, and so do we.
        x = x.astype(jnp.float32)
    lmin = params_ref[0].astype(x.dtype)          # hoisted SMEM reads
    inv_range = params_ref[1].astype(x.dtype)
    out_ref[...] = jnp.clip((x - lmin) * inv_range, 0, 1).astype(out_ref.dtype)


class RandomLevelsPresetPallas:
    """JAX/Pallas port of RandomLevelsPreset (levels-preset forward)."""

    def __init__(self, levels_min_range=(80, 90), levels_max_range=(205, 215),
                 p=1, num_labels=3, verbose=False):
        self.levels_min_range = [x / 255.0 for x in levels_min_range]
        self.levels_max_range = [x / 255.0 for x in levels_max_range]
        self.p = float(p)
        self.num_labels = int(num_labels)
        self.verbose = verbose
        # image is donated so the aliased pallas_call writes in place and the
        # label channels never move through HBM.
        self._jitted = jax.jit(self._forward, donate_argnums=(0,))

    # --- fused kernel call (sample channels only, output aliases input) -----
    def _levels_call(self, image, params):
        C, H, W = image.shape
        num_sample = C - self.num_labels
        c_blk, h_blk = _pick_block(num_sample, H, W,
                                   jnp.dtype(image.dtype).itemsize)
        grid = (num_sample // c_blk, pl.cdiv(H, h_blk))
        # TODO(synk): if production W is not a multiple of 128, pad W in the
        # caller so output stores stay lane-dense (avoids masked vst).
        img_spec = pl.BlockSpec((c_blk, h_blk, W), lambda ci, hi: (ci, hi, 0))
        return pl.pallas_call(
            _levels_kernel,
            out_shape=jax.ShapeDtypeStruct((C, H, W), image.dtype),
            grid=grid,
            in_specs=[
                pl.BlockSpec(memory_space=pltpu.MemorySpace.SMEM),  # params
                img_spec,                                           # image
            ],
            out_specs=img_spec,
            # Output aliases the (donated) image: label channel blocks are
            # never visited by the grid, so they are zero-traffic passthrough.
            input_output_aliases={1: 0},
            compiler_params=pltpu.CompilerParams(
                dimension_semantics=("parallel", "parallel")),
        )(params, image)

    # --- full forward (RNG + optional gate) ----------------------------------
    def _forward(self, image, key):
        kp, kmin, kmax = jax.random.split(key, 3)
        # TODO(synk): random.uniform(a, b) is inclusive of b; jax.random.uniform
        # samples [a, b) — negligible parity difference.
        lmin = jax.random.uniform(kmin, (), jnp.float32,
                                  minval=self.levels_min_range[0],
                                  maxval=self.levels_min_range[1])
        lmax = jax.random.uniform(kmax, (), jnp.float32,
                                  minval=self.levels_max_range[0],
                                  maxval=self.levels_max_range[1])
        params = jnp.stack([lmin, 1.0 / (lmax - lmin)]).astype(jnp.float32)

        if self.p >= 1.0:                      # static: always fires, no cond
            return self._levels_call(image, params)

        # 0 < p < 1: gate the whole pallas_call — the no-fire path does no DMA.
        apply = jax.random.uniform(kp) < self.p
        return jax.lax.cond(apply,
                            lambda im: self._levels_call(im, params),
                            lambda im: im,
                            image)

    def __call__(self, image, key):
        if self.p <= 0.0:                      # static no-op: no jit, no DMA
            return image
        return self._jitted(image, key)


if __name__ == "__main__":
    warnings.filterwarnings("ignore", message="Some donated buffers were not usable")

    key = jax.random.PRNGKey(0)
    k_img, k_fwd = jax.random.split(key)

    # Small CHW image: 4 sample channels + 3 label channels, lane-dense W.
    C, H, W = 7, 16, 128
    num_labels = 3
    img = jax.random.uniform(k_img, (C, H, W), dtype=jnp.float32)

    # --- pure-JAX reference with the identical on-device RNG stream ----------
    module = RandomLevelsPresetPallas(num_labels=num_labels)       # p = 1
    kp, kmin, kmax = jax.random.split(k_fwd, 3)
    lmin = jax.random.uniform(kmin, (), jnp.float32,
                              minval=module.levels_min_range[0],
                              maxval=module.levels_min_range[1])
    lmax = jax.random.uniform(kmax, (), jnp.float32,
                              minval=module.levels_max_range[0],
                              maxval=module.levels_max_range[1])
    inv_range = 1.0 / (lmax - lmin)
    sample_ref = jnp.clip((img[:-num_labels] - lmin) * inv_range, 0.0, 1.0)
    ref = jnp.concatenate([sample_ref, img[-num_labels:]], axis=0)

    # --- p = 1: transform always fires ---------------------------------------
    out = jax.block_until_ready(module(jnp.copy(img), k_fwd))      # donate a copy
    assert out.shape == (C, H, W), out.shape
    np.testing.assert_allclose(np.asarray(out), np.asarray(ref), atol=1e-6, rtol=1e-6)
    # Label channels pass through untouched (aliased, never visited).
    np.testing.assert_array_equal(np.asarray(out[-num_labels:]),
                                  np.asarray(img[-num_labels:]))

    # --- p = 0: static identity, no kernel, no DMA ----------------------------
    module_p0 = RandomLevelsPresetPallas(num_labels=num_labels, p=0)
    out_p0 = jax.block_until_ready(module_p0(img, k_fwd))
    np.testing.assert_array_equal(np.asarray(out_p0), np.asarray(img))

    # --- 0 < p < 1: lax.cond-gated kernel -------------------------------------
    module_p5 = RandomLevelsPresetPallas(num_labels=num_labels, p=0.5)
    out_p5 = jax.block_until_ready(module_p5(jnp.copy(img), k_fwd))
    applied = bool(jax.random.uniform(kp) < 0.5)
    ref_p5 = ref if applied else img
    np.testing.assert_allclose(np.asarray(out_p5), np.asarray(ref_p5),
                               atol=1e-6, rtol=1e-6)

    print("KERNEL_OK")
</pallas_src>

<mosaic_0001>
module attributes {stable_mosaic.version = 11 : i64} {
  func.func @_levels_kernel(%arg0: i32, %arg1: i32, %arg2: memref<2xf32, #tpu.memory_space<smem>>, %arg3: memref<4x16x128xf32, #tpu.memory_space<vmem>>, %arg4: memref<4x16x128xf32, #tpu.memory_space<vmem>>) attributes {dimension_semantics = [#tpu.dimension_semantics<parallel>, #tpu.dimension_semantics<parallel>], iteration_bounds = array<i64: 1, 1>, scalar_prefetch = 0 : i64, scratch_operands = 0 : i64, tpu.core_type = #tpu.core_type<tc>, window_params = [{transform_indices = @transform_0, window_bounds = array<i64: 2>}, {transform_indices = @transform_1, window_bounds = array<i64: 4, 16, 128>}, {transform_indices = @transform_2, window_bounds = array<i64: 4, 16, 128>}]} {
    %c0 = arith.constant 0 : index
    %c0_0 = arith.constant 0 : index
    %c0_1 = arith.constant 0 : index
    %0 = vector.load %arg3[%c0, %c0_0, %c0_1] : memref<4x16x128xf32, #tpu.memory_space<vmem>>, vector<4x16x128xf32>
    %c0_2 = arith.constant 0 : index
    %1 = memref.load %arg2[%c0_2] : memref<2xf32, #tpu.memory_space<smem>>
    %c1 = arith.constant 1 : index
    %2 = memref.load %arg2[%c1] : memref<2xf32, #tpu.memory_space<smem>>
    %3 = vector.broadcast %1 : f32 to vector<4x16x128xf32>
    %4 = arith.subf %0, %3 : vector<4x16x128xf32>
    %5 = vector.broadcast %2 : f32 to vector<4x16x128xf32>
    %6 = arith.mulf %4, %5 : vector<4x16x128xf32>
    %c0_i32 = arith.constant 0 : i32
    %c1_i32 = arith.constant 1 : i32
    %7 = arith.sitofp %c0_i32 : i32 to f32
    %8 = vector.broadcast %7 : f32 to vector<4x16x128xf32>
    %9 = arith.maximumf %8, %6 : vector<4x16x128xf32>
    %10 = arith.sitofp %c1_i32 : i32 to f32
    %11 = vector.broadcast %10 : f32 to vector<4x16x128xf32>
    %12 = arith.minimumf %11, %9 : vector<4x16x128xf32>
    %c0_3 = arith.constant 0 : index
    %c0_4 = arith.constant 0 : index
    %c0_5 = arith.constant 0 : index
    %13 = vector.load %arg4[%c0_3, %c0_4, %c0_5] : memref<4x16x128xf32, #tpu.memory_space<vmem>>, vector<4x16x128xf32>
    tpu.vector_store %arg4[%c0_3, %c0_4, %c0_5], %12 {strides = array<i32>} : memref<4x16x128xf32, #tpu.memory_space<vmem>>, vector<4x16x128xf32>,
    return
  }
  func.func @transform_0(%arg0: i32, %arg1: i32) -> i32 {
    %c0_i32 = arith.constant 0 : i32
    %c0_i32_0 = arith.constant 0 : i32
    return %c0_i32 : i32
  }
  func.func @transform_1(%arg0: i32, %arg1: i32) -> (i32, i32, i32) {
    %c0_i32 = arith.constant 0 : i32
    %c0_i32_0 = arith.constant 0 : i32
    return %arg0, %arg1, %c0_i32 : i32, i32, i32
  }
  func.func @transform_2(%arg0: i32, %arg1: i32) -> (i32, i32, i32) {
    %c0_i32 = arith.constant 0 : i32
    %c0_i32_0 = arith.constant 0 : i32
    return %arg0, %arg1, %c0_i32 : i32, i32, i32
  }
}

</mosaic_0001>

<llo_original>
// kernel: _forward.1
$region0: #{_forward.1}
  #allocation0 [shape = 'u32[]', space=smem, size = 0x4, offset = 0x4, fixed_abs, tag = 'smem constant byte address 0x4 - core index']
  #allocation1 [shape = 'u32[144,128]{1,0:T(1,128)}', space=vmem, size = 0x12000, scoped, tag = 'internal scratch']
  %s0 = inlined_call_operand.vmem [shape: f32[2], index: 0, kind: input, shape index: {}]
  %s1 = inlined_call_operand.hbm [shape: f32[7,16,128], index: 1, kind: input, shape index: {}, may-alias: {1,2}]
  %s2 = inlined_call_operand.hbm [shape: f32[7,16,128], index: 2, kind: output, shape index: {}, may-alias: {1,2}]
  %s3 = sld [smem:[#allocation0]]
  $region26: #{_forward.1} parent=0
    _
  %s5 = ssub.s32 1, %s3
  %s6 = scalar_select 0, %s5, %s3
  $region1: #{_forward.1} parent=0
    #allocation2 [shape = 'u8[512]{0}', space=smem, size = 0x200, scoped, tag = 'input window, operand 0, single buffered']
    #allocation3 [shape = 's32[1]{0}', space=sflag, size = 0x4, scoped, tag = 'scoped memory for _forward.1']
    #allocation4 [shape = 's32[1]{0}', space=sflag, size = 0x4, scoped, tag = 'scoped memory for _forward.1']
    #allocation5 [shape = 's32[1]{0}', space=sflag, size = 0x4, scoped, tag = 'scoped memory for _forward.1']
    #allocation6 [shape = 'u8[32768]{0}', space=vmem, size = 0x8000, scoped, tag = 'input window, operand 1, single buffered']
    #allocation7 [shape = 'u8[32768]{0}', space=vmem, size = 0x8000, scoped, tag = 'output window, operand 0, single buffered']
    %7 = vsyncpa [#allocation5], 0
    %8 = vsyncpa [#allocation3], 0
    %9 = vsyncpa [#allocation4], 0
    // Predicated region
    $region2: #{_forward.1} parent=1 // pred_check
      _
    $region3: #{_forward.1} parent=1 // pred_check_branch
      %11 = sbr.rel (0) target = $region5
    $region4: #{_forward.1} parent=1 // pred_region
      %s13 = ssub.s32 16, 16
      %14 = vsyncadd [#allocation5], %s13
      %s16 = sshll.u32 %s0, 4
      %s17 = int_to_ptr.vmem [resolvable:$true] %s16
      %19 = dma.vmem_to_smem %s17, 16, [#allocation2], [#allocation5]
    $region5: #{_forward.1} parent=1 // pred_fallthru
      _
    // Predicated region
    $region6: #{_forward.1} parent=1 // pred_check
      _
    $region7: #{_forward.1} parent=1 // pred_check_branch
      %21 = sbr.rel (0) target = $region9
    $region8: #{_forward.1} parent=1 // pred_region
      %s23 = ssub.s32 1024, 1024
      %24 = vsyncadd [#allocation3], %s23
      %s25 = sshll.u32 [#allocation6], 4
      %s26 = int_to_ptr.vmem [resolvable:$true] %s25
      %31 = dma.hbm_to_vmem [thread:$0]  %s1, 1024, %s26, [#allocation3], 128, 128, 8
    $region9: #{_forward.1} parent=1 // pred_fallthru
      _
    // Predicated region
    $region10: #{_forward.1} parent=1 // pred_check
      _
    $region11: #{_forward.1} parent=1 // pred_check_branch
      %33 = sbr.rel (0) target = $region13
    $region12: #{_forward.1} parent=1 // pred_region
      %34 = dma.done [#allocation5], 16
    $region13: #{_forward.1} parent=1 // pred_fallthru
      _
    // Predicated region
    $region14: #{_forward.1} parent=1 // pred_check
      _
    $region15: #{_forward.1} parent=1 // pred_check_branch
      %36 = sbr.rel (0) target = $region17
    $region16: #{_forward.1} parent=1 // pred_region
      %37 = dma.done [#allocation3], 1024
    $region17: #{_forward.1} parent=1 // pred_fallthru
      _
    %38 = sfence
    %v39 = vld [vmem:[#allocation6] sm:$0xff]
    %v40 = vld [vmem:[#allocation6 + $0x8] sm:$0xff]
    %v41 = vld [vmem:[#allocation6 + $0x10] sm:$0xff]
    %v42 = vld [vmem:[#allocation6 + $0x18] sm:$0xff]
    %v43 = vld [vmem:[#allocation6 + $0x20] sm:$0xff]
    %v44 = vld [vmem:[#allocation6 + $0x28] sm:$0xff]
    %v45 = vld [vmem:[#allocation6 + $0x30] sm:$0xff]
    %v46 = vld [vmem:[#allocation6 + $0x38] sm:$0xff]
    %s47 = sld [smem:[#allocation2]]
    %s48 = sld [smem:[#allocation2 + $0x1]]
    %v49 = vstv %s47
    %v50 = vsub.f32 %v39, %v49
    %v51 = vsub.f32 %v40, %v49
    %v52 = vsub.f32 %v41, %v49
    %v53 = vsub.f32 %v42, %v49
    %v54 = vsub.f32 %v43, %v49
    %v55 = vsub.f32 %v44, %v49
    %v56 = vsub.f32 %v45, %v49
    %v57 = vsub.f32 %v46, %v49
    %v58 = vstv %s48
    %v59 = vmul.f32 %v50, %v58
    %v60 = vmul.f32 %v51, %v58
    %v61 = vmul.f32 %v52, %v58
    %v62 = vmul.f32 %v53, %v58
    %v63 = vmul.f32 %v54, %v58
    %v64 = vmul.f32 %v55, %v58
    %v65 = vmul.f32 %v56, %v58
    %v66 = vmul.f32 %v57, %v58
    %v67 = vmax.f32 %v59, 0.0
    %v68 = vmax.f32 %v60, 0.0
    %v69 = vmax.f32 %v61, 0.0
    %v70 = vmax.f32 %v62, 0.0
    %v71 = vmax.f32 %v63, 0.0
    %v72 = vmax.f32 %v64, 0.0
    %v73 = vmax.f32 %v65, 0.0
    %v74 = vmax.f32 %v66, 0.0
    %v75 = vmin.f32 %v67, 1.0
    %v76 = vmin.f32 %v68, 1.0
    %v77 = vmin.f32 %v69, 1.0
    %v78 = vmin.f32 %v70, 1.0
    %v79 = vmin.f32 %v71, 1.0
    %v80 = vmin.f32 %v72, 1.0
    %v81 = vmin.f32 %v73, 1.0
    %v82 = vmin.f32 %v74, 1.0
    %83 = vst [vmem:[#allocation7] sm:$0xff] %v75
    %84 = vst [vmem:[#allocation7 + $0x8] sm:$0xff] %v76
    %85 = vst [vmem:[#allocation7 + $0x10] sm:$0xff] %v77
    %86 = vst [vmem:[#allocation7 + $0x18] sm:$0xff] %v78
    %87 = vst [vmem:[#allocation7 + $0x20] sm:$0xff] %v79
    %88 = vst [vmem:[#allocation7 + $0x28] sm:$0xff] %v80
    %89 = vst [vmem:[#allocation7 + $0x30] sm:$0xff] %v81
    %90 = vst [vmem:[#allocation7 + $0x38] sm:$0xff] %v82
    // Predicated region
    $region18: #{_forward.1} parent=1 // pred_check
      _
    $region19: #{_forward.1} parent=1 // pred_check_branch
      %92 = sbr.rel (0) target = $region21
    $region20: #{_forward.1} parent=1 // pred_region
      %s94 = ssub.s32 1024, 1024
      %95 = vsyncadd [#allocation4], %s94
      %s96 = sshll.u32 [#allocation7], 4
      %s97 = int_to_ptr.vmem [resolvable:$true] %s96
      %102 = dma.vmem_to_hbm [thread:$0]  %s97, 1024, %s2, [#allocation4], 128, 128, 8
    $region21: #{_forward.1} parent=1 // pred_fallthru
      _
    // Predicated region
    $region22: #{_forward.1} parent=1 // pred_check
      _
    $region23: #{_forward.1} parent=1 // pred_check_branch
      %104 = sbr.rel (0) target = $region25
    $region24: #{_forward.1} parent=1 // pred_region
      %105 = dma.done [#allocation4], 1024
    $region25: #{_forward.1} parent=1 // pred_fallthru
      _
    %106 = vsyncpa [#allocation3], 1
    %107 = vsyncpa [#allocation4], 1
    %108 = vsyncpa [#allocation5], 1

</llo_original>
